<compile_context>
chip_gen: v6e
topology: v6e:2x2x1
jax: 0.10.0
libtpu: 0.0.40
codegen_flags: <defaults>
</compile_context>

<pallas_src>
import jax
import jax.numpy as jnp
from jax.experimental import pallas as pl
from jax.experimental.pallas import tpu as pltpu  # noqa: F401  (TPU backend parity)

# Input 0 is aliased to output 0.  The kernel body writes nothing, so
# correctness rests entirely on this alias -- keep them in sync.
_ALIAS = {0: 0}


def _nop_kernel(x_ref, o_ref):
    # Intentionally empty: the output buffer IS the input buffer via
    # input_output_aliases=_ALIAS.  Do NOT remove the alias without making
    # this kernel write o_ref, or it will return uninitialized HBM.
    del x_ref, o_ref


def nop_layer_forward(x: jax.Array) -> jax.Array:
    """Identity forward pass of NopLayer routed through a Pallas TPU call.

    The kernel moves zero bytes.  For a truly zero-cost path, call under
    `jax.jit(nop_layer_forward, donate_argnums=(0,))` so XLA can honor the
    input->output alias in place instead of inserting a defensive HBM copy
    (standard donation hazard: do not reuse the donated `x` afterwards).
    If a Pallas boundary is not contractually required, returning `x`
    directly is strictly cheaper than any custom call.
    """
    # The empty kernel body is only valid together with the 0 -> 0 alias.
    assert _ALIAS.get(0) == 0, "empty kernel body requires input_output_aliases={0: 0}"
    return pl.pallas_call(
        _nop_kernel,
        out_shape=jax.ShapeDtypeStruct(x.shape, x.dtype),
        # Leave the array where it lives (HBM): no grid, no tiling, no DMA,
        # no (8,128) constraints, works for any shape/dtype unchanged.
        in_specs=[pl.BlockSpec(memory_space=pl.ANY)],
        out_specs=pl.BlockSpec(memory_space=pl.ANY),
        input_output_aliases=_ALIAS,
        # Declare the op free so XLA schedules/overlaps around it as if it
        # weren't there (default custom-call cost would act as a barrier).
        cost_estimate=pl.CostEstimate(flops=0, transcendentals=0, bytes_accessed=0),
    )(x)


if __name__ == "__main__":
    key = jax.random.PRNGKey(0)
    # NCHW feature map, small shape consistent with a conv-style layer.
    x = jax.random.normal(key, (2, 4, 16, 16), dtype=jnp.float32)

    # Path 1: non-donated call (XLA may insert one defensive copy to honor
    # the alias; still correct, still zero bytes moved by the kernel itself).
    y = jax.block_until_ready(nop_layer_forward(x))
    assert y.shape == x.shape
    assert y.dtype == x.dtype
    assert bool(jnp.all(y == x))

    # Path 2: recommended call convention — jit + donation, alias honored
    # in place (true no-op).  Use a separate buffer so donating it does not
    # invalidate `x` used for the reference comparison.
    donated_fwd = jax.jit(nop_layer_forward, donate_argnums=(0,))
    x2 = x + 0.0
    y2 = jax.block_until_ready(donated_fwd(x2))
    assert bool(jnp.all(y2 == x))

    print("KERNEL_OK")
</pallas_src>

<mosaic_0001>
module attributes {stable_mosaic.version = 11 : i64} {
  func.func @_nop_kernel(%arg0: memref<2x4x16x16xf32, #tpu.memory_space<any>>, %arg1: memref<2x4x16x16xf32, #tpu.memory_space<any>>) attributes {dimension_semantics = [], scalar_prefetch = 0 : i64, scratch_operands = 0 : i64, tpu.core_type = #tpu.core_type<tc>} {
    return
  }
}

</mosaic_0001>

<llo_original>
// kernel: tpu_custom_call.1
$region0: #{tpu_custom_call.1}
  #allocation0 [shape = 'u32[]', space=smem, size = 0x4, offset = 0x4, fixed_abs, tag = 'smem constant byte address 0x4 - core index']
  #allocation1 [shape = 'u32[144,128]{1,0:T(1,128)}', space=vmem, size = 0x12000, scoped, tag = 'internal scratch']
  %s0 = inlined_call_operand.hbm [shape: f32[2,4,16,16], index: 0, kind: input, shape index: {}, may-alias: {0,1}]
  %s1 = inlined_call_operand.hbm [shape: f32[2,4,16,16], index: 1, kind: output, shape index: {}, may-alias: {0,1}]
  %s2 = sld [smem:[#allocation0]]
  $region2: #{tpu_custom_call.1} parent=0
    _
  %s4 = ssub.s32 1, %s2
  %s5 = scalar_select 0, %s4, %s2

</llo_original>
